<compile_context>
chip_gen: v7x
topology: tpu7x:2x2x1
jax: 0.10.0
libtpu: 0.0.40
codegen_flags: <defaults>
</compile_context>

<pallas_src>
import functools

import jax
import jax.numpy as jnp
import numpy as np
from jax.experimental import pallas as pl
from jax.experimental.pallas import tpu as pltpu


# --------------------------------------------------------------------------
# Kernel
# --------------------------------------------------------------------------
def _fourier_kernel(x_ref, ch_ref, shn_ref, w2_ref, o_ref, t_scr, *,
                    batches_per_chunk):
    # x_ref:   (TB*S, H)   f32  -- TB batches stacked along the M dimension
    # ch_ref:  (H, TH)     bf16 -- cos part of hidden-dim DFT, column tile
    # shn_ref: (H, TH)     bf16 -- -sin part of hidden-dim DFT, column tile
    # w2_ref:  (S, 2S)     bf16 -- [C_S | S_S] sequence-dim DFT
    # o_ref:   (TB*S, TH)  out  -- real part of the 2D FFT, this column tile
    # t_scr:   (TB, 2S, TH) bf16 scratch -- [t_re ; t_im] stacked per batch
    rows = x_ref.shape[0]
    seq = w2_ref.shape[0]
    tb = rows // seq

    ch = ch_ref[...]
    shn = shn_ref[...]

    # ---- Stage 1: DFT along the hidden dim -------------------------------
    # Input arrives as f32 directly from HBM; cast to bf16 on the VPU here
    # (no separate wrapper-side cast pass => ~half the input HBM traffic).
    # Chunk over whole batches so the live f32 dot result stays small, then
    # stage the bf16 result into t_scr as [t_re ; t_im] per batch.
    for c0 in range(0, tb, batches_per_chunk):
        c1 = min(tb, c0 + batches_per_chunk)
        xb = x_ref[c0 * seq:c1 * seq, :].astype(jnp.bfloat16)
        t_re = jnp.dot(xb, ch, preferred_element_type=jnp.float32)
        t_im = jnp.dot(xb, shn, preferred_element_type=jnp.float32)
        for b in range(c0, c1):
            lo = (b - c0) * seq
            t_scr[b, 0:seq, :] = t_re[lo:lo + seq, :].astype(jnp.bfloat16)
            t_scr[b, seq:2 * seq, :] = t_im[lo:lo + seq, :].astype(jnp.bfloat16)

    # ---- Stage 2: DFT along the sequence dim (real part only) ------------
    # One MXU matmul per batch with K = 2S:
    #   out_b = [C_S | S_S] @ [t_re_b ; t_im_b]
    w2 = w2_ref[...]
    for b in range(tb):
        o_ref[b * seq:(b + 1) * seq, :] = jnp.dot(
            w2, t_scr[b], preferred_element_type=jnp.float32
        ).astype(o_ref.dtype)


# --------------------------------------------------------------------------
# Constants (built once per (S, H), cached)
# --------------------------------------------------------------------------
@functools.lru_cache(maxsize=None)
def _fourier_consts(seq: int, hidden: int):
    """bf16 DFT matrices: C_H, -S_H (hidden dim) and [C_S | S_S] (seq dim)."""
    def dft_parts(n):
        jk = np.outer(np.arange(n), np.arange(n)).astype(np.float64)
        ang = 2.0 * np.pi * jk / float(n)
        return np.cos(ang), np.sin(ang)

    ch_np, sh_np = dft_parts(hidden)
    cs_np, ss_np = dft_parts(seq)
    to_bf16 = lambda a: jnp.asarray(a.astype(np.float32)).astype(jnp.bfloat16)
    ch = to_bf16(ch_np)                                     # (H, H)
    shn = to_bf16(-sh_np)                                   # (H, H)
    w2 = to_bf16(np.concatenate([cs_np, ss_np], axis=1))    # (S, 2S)
    return ch, shn, w2


# --------------------------------------------------------------------------
# Sizing heuristics (generation-aware via queried VMEM capacity)
# --------------------------------------------------------------------------
@functools.lru_cache(maxsize=None)
def _vmem_capacity_bytes() -> int:
    """Physical per-core VMEM; conservative 64 MiB (v7x) if the query fails."""
    try:
        cap = int(getattr(pltpu.get_tpu_info(), "vmem_capacity_bytes", 0))
        if cap > 0:
            return cap
    except Exception:  # hardware-info query only; never masks a kernel failure
        pass
    return 64 << 20


def _choose_hidden_tile(H: int) -> int:
    """Column tile of the hidden dim.  Splitting only when H is large keeps
    the per-step w blocks / intermediates small (fits v7x's 64 MiB VMEM) and
    gives the 2-D grid enough steps for both v7x TensorCores."""
    if H <= 512 or H % 128 != 0:
        return H
    for th in (512, 384, 256, 128):
        if H % th == 0:
            return th
    return H


def _choose_batch_tile(B: int, S: int, H: int, cap: int, hidden_tiles: int) -> int:
    """Largest layout-legal number of batches per grid step, budgeted from the
    actual VMEM capacity.  Prefers sublane-aligned rows, then (on small-VMEM /
    v7x-like parts) an even total grid, then 128-aligned rows, then size."""
    # x-input (f32) block budget ~ 3/32 of physical VMEM: 12 MiB on 128 MiB
    # parts (v5e/v6e), 6 MiB on v7x.  The full plan then sits well under the
    # 75%-of-VMEM limit with 2x headroom.
    budget = max(4 << 20, (3 * cap) // 32)
    max_rows = max(S, budget // max(1, 4 * H))
    prefer_even_grid = cap <= (96 << 20)   # v7x-like: 2 TCs, 64 MiB VMEM each

    best_tb, best_key = 1, None
    for tb in range(1, B + 1):
        if B % tb:
            continue
        rows = tb * S
        if rows > max_rows and tb != 1:
            continue
        grid_total = (B // tb) * hidden_tiles
        key = (
            1 if (rows % 8 == 0 or tb == B) else 0,              # sublane legal
            (1 if grid_total % 2 == 0 else 0) if prefer_even_grid else 0,
            1 if rows % 128 == 0 else 0,                          # full MXU M pass
            min(rows, 4096),                                      # amortize step cost
        )
        if best_key is None or key > best_key:
            best_tb, best_key = tb, key

    tb = best_tb
    # Degenerate S (not a multiple of 8): the only always-legal block is the
    # full array.  TODO(synk): pad S to a multiple of 8 instead for huge B.
    if (tb * S) % 8 != 0 and tb != B:
        tb = B
    return tb


def _vmem_limit_bytes(tb: int, S: int, H: int, th: int, chunk_rows: int,
                      cap: int) -> int:
    bf16, f32 = 2, 4
    rows = tb * S
    need = (
        2 * rows * H * f32                      # x block (f32), double-buffered
        + 2 * rows * th * f32                   # out block, double-buffered
        + 2 * 2 * H * th * bf16                 # C_H / -S_H tiles, double-buffered
        + 2 * S * (2 * S) * bf16                # [C_S | S_S], double-buffered
        + tb * 2 * S * th * bf16                # stage-1 bf16 scratch
        + chunk_rows * th * (2 * f32 + 2 * bf16)  # live f32 chunk + bf16 casts
        + chunk_rows * H * bf16                 # bf16 copy of the x chunk
    )
    # 2x headroom, floor 32 MiB, but never more than 75% of physical VMEM
    # (48 MiB on v7x, 96 MiB on v5e/v6e) -- leaves room for Mosaic scratch.
    ceiling = (3 * cap) // 4
    return int(min(max(2 * need, 32 << 20), ceiling))


# --------------------------------------------------------------------------
# pallas_call builder (cached per configuration)
# --------------------------------------------------------------------------
@functools.lru_cache(maxsize=None)
def _build_call(B: int, S: int, H: int, tb: int, th: int, cb: int, cap: int,
                out_dtype):
    rows = tb * S
    kernel = functools.partial(_fourier_kernel, batches_per_chunk=cb)
    grid_spec = pltpu.PrefetchScalarGridSpec(
        num_scalar_prefetch=0,
        grid=(B // tb, H // th),                 # hidden tiles innermost: the x
        in_specs=[                               # block index is unchanged, so
            pl.BlockSpec((rows, H), lambda b, hj: (b, 0)),    # it is not re-DMAed
            pl.BlockSpec((H, th), lambda b, hj: (0, hj)),     # C_H column tile
            pl.BlockSpec((H, th), lambda b, hj: (0, hj)),     # -S_H column tile
            pl.BlockSpec((S, 2 * S), lambda b, hj: (0, 0)),   # [C_S | S_S]
        ],
        out_specs=pl.BlockSpec((rows, th), lambda b, hj: (b, hj)),
        scratch_shapes=[pltpu.VMEM((tb, 2 * S, th), jnp.bfloat16)],
    )
    return pl.pallas_call(
        kernel,
        out_shape=jax.ShapeDtypeStruct((B * S, H), out_dtype),
        grid_spec=grid_spec,
        compiler_params=pltpu.CompilerParams(
            dimension_semantics=("parallel", "parallel"),
            vmem_limit_bytes=_vmem_limit_bytes(tb, S, H, th, cb * S, cap),
        ),
    )


# --------------------------------------------------------------------------
# Public wrapper
# --------------------------------------------------------------------------
def fourier_transform_layer(hidden_states: jax.Array,
                            out_dtype=jnp.float32) -> jax.Array:
    """Pallas equivalent of FourierTransformLayer.forward.

    hidden_states: [B, S, H].  Returns [B, S, H] = real part of the 2D FFT
    over the last two dims.  Default f32 output matches the PyTorch module;
    pass out_dtype=jnp.bfloat16 to halve writeback HBM traffic if the
    downstream consumer accepts it.
    """
    B, S, H = hidden_states.shape
    # `.float()` semantics; no bf16 cast here -- the kernel casts in VMEM.
    x2d = hidden_states.astype(jnp.float32).reshape(B * S, H)

    cap = _vmem_capacity_bytes()
    th = _choose_hidden_tile(H)
    tb = _choose_batch_tile(B, S, H, cap, H // th)
    cb = max(1, min(tb, max(1, 512 // S)))       # stage-1 chunk: whole batches,
                                                 # ~512 rows of live f32 result
    ch, shn, w2 = _fourier_consts(S, H)
    call = _build_call(B, S, H, tb, th, cb, cap, out_dtype)
    return call(x2d, ch, shn, w2).reshape(B, S, H)


if __name__ == "__main__":
    key = jax.random.PRNGKey(0)
    B, S, H = 2, 8, 32  # [batch, seq, hidden] -- small shapes for the check
    hidden_states = jax.random.normal(key, (B, S, H), dtype=jnp.float32)

    out = jax.block_until_ready(fourier_transform_layer(hidden_states))

    # Reference (on host): real part of fft(fft(x.float(), dim=-1), dim=-2).
    x_np = np.asarray(hidden_states, dtype=np.float32)
    ref = np.real(np.fft.fft(np.fft.fft(x_np, axis=-1), axis=-2)).astype(np.float32)

    # bf16 matmul inputs with f32 accumulation: loosened tolerance.
    np.testing.assert_allclose(np.asarray(out), ref, rtol=5e-2, atol=1.0)

    print("KERNEL_OK")
</pallas_src>

<mosaic_0001>
module attributes {stable_mosaic.version = 11 : i64} {
  func.func @_fourier_kernel(%arg0: i32, %arg1: i32, %arg2: memref<8x32xf32, #tpu.memory_space<vmem>>, %arg3: memref<32x32xbf16, #tpu.memory_space<vmem>>, %arg4: memref<32x32xbf16, #tpu.memory_space<vmem>>, %arg5: memref<8x16xbf16, #tpu.memory_space<vmem>>, %arg6: memref<8x32xf32, #tpu.memory_space<vmem>>, %arg7: memref<1x16x32xbf16, #tpu.memory_space<vmem>>) attributes {dimension_semantics = [#tpu.dimension_semantics<parallel>, #tpu.dimension_semantics<parallel>], iteration_bounds = array<i64: 2, 1>, scalar_prefetch = 0 : i64, scratch_operands = 1 : i64, tpu.core_type = #tpu.core_type<tc>, window_params = [{transform_indices = @transform_0, window_bounds = array<i64: 8, 32>}, {transform_indices = @transform_1, window_bounds = array<i64: 32, 32>}, {transform_indices = @transform_2, window_bounds = array<i64: 32, 32>}, {pipeline_mode = #tpu.pipeline_mode<synchronous>, transform_indices = @transform_3, window_bounds = array<i64: 8, 16>}, {transform_indices = @transform_4, window_bounds = array<i64: 8, 32>}]} {
    %c0 = arith.constant 0 : index
    %c0_0 = arith.constant 0 : index
    %0 = vector.load %arg3[%c0, %c0_0] : memref<32x32xbf16, #tpu.memory_space<vmem>>, vector<32x32xbf16>
    %c0_1 = arith.constant 0 : index
    %c0_2 = arith.constant 0 : index
    %1 = vector.load %arg4[%c0_1, %c0_2] : memref<32x32xbf16, #tpu.memory_space<vmem>>, vector<32x32xbf16>
    %c0_3 = arith.constant 0 : index
    %c0_4 = arith.constant 0 : index
    %2 = vector.load %arg2[%c0_3, %c0_4] : memref<8x32xf32, #tpu.memory_space<vmem>>, vector<8x32xf32>
    %3 = arith.truncf %2 : vector<8x32xf32> to vector<8x32xbf16>
    %cst = arith.constant dense<0.000000e+00> : vector<8x32xf32>
    %4 = tpu.matmul %3, %0, %cst {dimension_numbers = #tpu.dot_dimension_numbers<[1], [0], [0], [1], [0, 0, 1, 1], [], []>} : vector<8x32xbf16>, vector<32x32xbf16>, vector<8x32xf32> -> vector<8x32xf32>
    %cst_5 = arith.constant dense<0.000000e+00> : vector<8x32xf32>
    %5 = tpu.matmul %3, %1, %cst_5 {dimension_numbers = #tpu.dot_dimension_numbers<[1], [0], [0], [1], [0, 0, 1, 1], [], []>} : vector<8x32xbf16>, vector<32x32xbf16>, vector<8x32xf32> -> vector<8x32xf32>
    %6 = arith.truncf %4 : vector<8x32xf32> to vector<8x32xbf16>
    %c0_6 = arith.constant 0 : index
    %c0_7 = arith.constant 0 : index
    %c0_8 = arith.constant 0 : index
    %7 = vector.load %arg7[%c0_6, %c0_7, %c0_8] : memref<1x16x32xbf16, #tpu.memory_space<vmem>>, vector<1x8x32xbf16>
    %8 = vector.shape_cast %7 : vector<1x8x32xbf16> to vector<8x32xbf16>
    %9 = vector.shape_cast %6 : vector<8x32xbf16> to vector<1x8x32xbf16>
    tpu.vector_store %arg7[%c0_6, %c0_7, %c0_8], %9 {strides = array<i32>} : memref<1x16x32xbf16, #tpu.memory_space<vmem>>, vector<1x8x32xbf16>,
    %10 = arith.truncf %5 : vector<8x32xf32> to vector<8x32xbf16>
    %c0_9 = arith.constant 0 : index
    %c8 = arith.constant 8 : index
    %c0_10 = arith.constant 0 : index
    %11 = vector.load %arg7[%c0_9, %c8, %c0_10] : memref<1x16x32xbf16, #tpu.memory_space<vmem>>, vector<1x8x32xbf16>
    %12 = vector.shape_cast %11 : vector<1x8x32xbf16> to vector<8x32xbf16>
    %13 = vector.shape_cast %10 : vector<8x32xbf16> to vector<1x8x32xbf16>
    tpu.vector_store %arg7[%c0_9, %c8, %c0_10], %13 {strides = array<i32>} : memref<1x16x32xbf16, #tpu.memory_space<vmem>>, vector<1x8x32xbf16>,
    %c0_11 = arith.constant 0 : index
    %c0_12 = arith.constant 0 : index
    %14 = vector.load %arg5[%c0_11, %c0_12] : memref<8x16xbf16, #tpu.memory_space<vmem>>, vector<8x16xbf16>
    %c0_13 = arith.constant 0 : index
    %c0_14 = arith.constant 0 : index
    %c0_15 = arith.constant 0 : index
    %15 = vector.load %arg7[%c0_13, %c0_14, %c0_15] : memref<1x16x32xbf16, #tpu.memory_space<vmem>>, vector<1x16x32xbf16>
    %16 = vector.shape_cast %15 : vector<1x16x32xbf16> to vector<16x32xbf16>
    %cst_16 = arith.constant dense<0.000000e+00> : vector<8x32xf32>
    %17 = tpu.matmul %14, %16, %cst_16 {dimension_numbers = #tpu.dot_dimension_numbers<[1], [0], [0], [1], [0, 0, 1, 1], [], []>} : vector<8x16xbf16>, vector<16x32xbf16>, vector<8x32xf32> -> vector<8x32xf32>
    %c0_17 = arith.constant 0 : index
    %c0_18 = arith.constant 0 : index
    %18 = vector.load %arg6[%c0_17, %c0_18] : memref<8x32xf32, #tpu.memory_space<vmem>>, vector<8x32xf32>
    tpu.vector_store %arg6[%c0_17, %c0_18], %17 {strides = array<i32>} : memref<8x32xf32, #tpu.memory_space<vmem>>, vector<8x32xf32>,
    return
  }
  func.func @transform_0(%arg0: i32, %arg1: i32) -> (i32, i32) {
    %c0_i32 = arith.constant 0 : i32
    %c0_i32_0 = arith.constant 0 : i32
    return %arg0, %c0_i32 : i32, i32
  }
  func.func @transform_1(%arg0: i32, %arg1: i32) -> (i32, i32) {
    %c0_i32 = arith.constant 0 : i32
    %c0_i32_0 = arith.constant 0 : i32
    return %c0_i32, %arg1 : i32, i32
  }
  func.func @transform_2(%arg0: i32, %arg1: i32) -> (i32, i32) {
    %c0_i32 = arith.constant 0 : i32
    %c0_i32_0 = arith.constant 0 : i32
    return %c0_i32, %arg1 : i32, i32
  }
  func.func @transform_3(%arg0: i32, %arg1: i32) -> (i32, i32) {
    %c0_i32 = arith.constant 0 : i32
    %c0_i32_0 = arith.constant 0 : i32
    %c0_i32_1 = arith.constant 0 : i32
    return %c0_i32, %c0_i32_0 : i32, i32
  }
  func.func @transform_4(%arg0: i32, %arg1: i32) -> (i32, i32) {
    %c0_i32 = arith.constant 0 : i32
    return %arg0, %arg1 : i32, i32
  }
}

</mosaic_0001>

<llo_original>
// kernel: tpu_custom_call.1
$region0: #{tpu_custom_call.1}
  #allocation0 [shape = 'u32[]', space=smem, size = 0x4, offset = 0x4, fixed_abs, tag = 'smem constant byte address 0x4 - core index']
  #allocation1 [shape = 'u32[144,128]{1,0:T(1,128)}', space=vmem, size = 0x12000, scoped, tag = 'internal scratch']
  #allocation2 [shape = 'bf16[1,16,32]{2,1,0:T(16,128)(2,1)}', space=vmem, size = 0x1000, scoped, tag = 'scratch operand']
  %s0 = inlined_call_operand.hbm [shape: f32[16,32], index: 0, kind: input, shape index: {}]
  %s1 = inlined_call_operand.hbm [shape: bf16[32,32], index: 1, kind: input, shape index: {}]
  %s2 = inlined_call_operand.hbm [shape: bf16[32,32], index: 2, kind: input, shape index: {}]
  %s3 = inlined_call_operand.vmem [shape: bf16[8,16], index: 3, kind: input, shape index: {}]
  %s4 = inlined_call_operand.hbm [shape: f32[16,32], index: 4, kind: output, shape index: {}]
  %s5 = sld [smem:[#allocation0]]
  $region61: #{tpu_custom_call.1} parent=0
    _
  %s7 = ssub.s32 1, %s5
  %s8 = scalar_select 0, %s7, %s5
  $region1: #{tpu_custom_call.1} parent=0
    #allocation3 [shape = 'u8[8192]{0}', space=vmem, size = 0x2000, scoped, tag = 'input window, operand 0']
    #allocation4 [shape = 's32[2]{0}', space=sflag, size = 0x8, scoped, tag = 'scoped memory for tpu_custom_call.1']
    #allocation5 [shape = 's32[2]{0}', space=sflag, size = 0x8, scoped, tag = 'scoped memory for tpu_custom_call.1']
    #allocation6 [shape = 'u8[8192]{0}', space=vmem, size = 0x2000, scoped, tag = 'input window, operand 1, single buffered']
    #allocation7 [shape = 's32[1]{0}', space=sflag, size = 0x4, scoped, tag = 'scoped memory for tpu_custom_call.1']
    #allocation8 [shape = 'u8[8192]{0}', space=vmem, size = 0x2000, scoped, tag = 'input window, operand 2, single buffered']
    #allocation9 [shape = 'u8[8192]{0}', space=vmem, size = 0x2000, scoped, tag = 'output window, operand 0']
    %9 = vsyncpa [#allocation4], 0
    %s10 = scalar_lea.sflag [#allocation4], 1
    %11 = vsyncpa %s10, 0
    %12 = vsyncpa [#allocation7], 0
    %13 = vsyncpa [#allocation5], 0
    %s14 = scalar_lea.sflag [#allocation5], 1
    %15 = vsyncpa %s14, 0
    loop: start=0, step=1, limit=4
    $region2: #{tpu_custom_call.1} parent=1 // loop_pre_header
      _
    $region3: #{tpu_custom_call.1} parent=1 // loop_header
      %s17 = sphi 0, %s21
      %p18 = scmp.ge.s32.totalorder %s17, 4
      %s24 = sphi 0, %s36
      %s25 = sphi 0, %s32
      %s26 = sphi 0, %s24
      %s27 = sphi 0, %s25
      %s28 = sphi 0, %s26
      %s29 = sphi 0, %s27
      %s39 = sphi 0, %s41
      %s42 = sphi 0, %s39
      %s43 = sphi 0, %s42
      %s59 = sphi 0, %s43
      %s65 = sphi 0, %s67
      %s68 = sphi 0, %s65
      %s69 = sphi 0, %s68
      %s85 = sphi 0, %s69
      %s91 = sphi 0, %s93
      %s94 = sphi 0, %s91
      %s95 = sphi 0, %s94
      %s111 = sphi 0, %s95
      %s115 = sphi 0, %s115
      %s117 = sphi 0, %s115
      %s118 = sphi 0, %s117
      %s132 = sphi 0, %s118
      %s140 = sphi 0, %s142
      %s143 = sphi 0, %s140
      %s144 = sphi 0, %s143
      %s160 = sphi 0, %s144
    $region4: #{tpu_custom_call.1} parent=1 // loop_header_branch
      %20 = sbr.rel (%p18) target = $region8
    $region5: #{tpu_custom_call.1} parent=1 // loop_body
      %s22 = ssub.s32 %s17, 1
      %s23 = ssub.s32 %s17, 2
      %s30 = sadd.s32 1, %s25
      %p31 = scmp.ge.s32.totalorder %s30, 1
      %s32 = scalar_select %p31, 0, %s30
      %s33 = sadd.s32 1, %s24
      %s34 = scalar_select %p31, %s33, %s24
      %p35 = scmp.ge.s32.totalorder %s34, 2
      %s36 = scalar_select %p35, 0, %s34
      %s37 = ssub.s32 %s24, %s36
      %p38 = scmp.eq.s32.totalorder %s37, 0
      %s40 = sadd.s32 %s39, 1
      %s41 = scalar_select %p38, %s39, %s40
      %p44 = pneg %p38
      %p45 = scmp.eq.s32.totalorder %s17, 1
      %p46 = por %p44, %p45
      %p47 = scmp.ne.s32.totalorder %s39, %s42
      %p48 = scmp.eq.s32.totalorder %s17, 0
      %p49 = por %p47, %p48
      %p50 = scmp.ne.s32.totalorder %s39, %s42
      %p51 = scmp.eq.s32.totalorder %s22, 1
      %p52 = por %p50, %p51
      %p53 = scmp.ne.s32.totalorder %s42, %s43
      %p54 = scmp.eq.s32.totalorder %s22, 0
      %p55 = por %p53, %p54
      %p56 = scmp.ne.s32.totalorder %s42, %s43
      %p57 = scmp.eq.s32.totalorder %s23, 1
      %p58 = por %p56, %p57
      %p60 = scmp.ne.s32.totalorder %s43, %s59
      %p61 = scmp.eq.s32.totalorder %s23, 0
      %p62 = por %p60, %p61
      %s63 = ssub.s32 %s25, %s32
      %p64 = scmp.eq.s32.totalorder %s63, 0
      %s66 = sadd.s32 %s65, 1
      %s67 = scalar_select %p64, %s65, %s66
      %p70 = pneg %p64
      %p71 = scmp.eq.s32.totalorder %s17, 1
      %p72 = por %p70, %p71
      %p73 = scmp.ne.s32.totalorder %s65, %s68
      %p74 = scmp.eq.s32.totalorder %s17, 0
      %p75 = por %p73, %p74
      %p76 = scmp.ne.s32.totalorder %s65, %s68
      %p77 = scmp.eq.s32.totalorder %s22, 1
      %p78 = por %p76, %p77
      %p79 = scmp.ne.s32.totalorder %s68, %s69
      %p80 = scmp.eq.s32.totalorder %s22, 0
      %p81 = por %p79, %p80
      %p82 = scmp.ne.s32.totalorder %s68, %s69
      %p83 = scmp.eq.s32.totalorder %s23, 1
      %p84 = por %p82, %p83
      %p86 = scmp.ne.s32.totalorder %s69, %s85
      %p87 = scmp.eq.s32.totalorder %s23, 0
      %p88 = por %p86, %p87
      %s89 = ssub.s32 %s25, %s32
      %p90 = scmp.eq.s32.totalorder %s89, 0
      %s92 = sadd.s32 %s91, 1
      %s93 = scalar_select %p90, %s91, %s92
      %p96 = pneg %p90
      %p97 = scmp.eq.s32.totalorder %s17, 1
      %p98 = por %p96, %p97
      %p99 = scmp.ne.s32.totalorder %s91, %s94
      %p100 = scmp.eq.s32.totalorder %s17, 0
      %p101 = por %p99, %p100
      %p102 = scmp.ne.s32.totalorder %s91, %s94
      %p103 = scmp.eq.s32.totalorder %s22, 1
      %p104 = por %p102, %p103
      %p105 = scmp.ne.s32.totalorder %s94, %s95
      %p106 = scmp.eq.s32.totalorder %s22, 0
      %p107 = por %p105, %p106
      %p108 = scmp.ne.s32.totalorder %s94, %s95
      %p109 = scmp.eq.s32.totalorder %s23, 1
      %p110 = por %p108, %p109
      %p112 = scmp.ne.s32.totalorder %s95, %s111
      %p113 = scmp.eq.s32.totalorder %s23, 0
      %p114 = por %p112, %p113
      %s116 = sadd.s32 %s115, 1
      %p119 = scmp.eq.s32.totalorder %s17, 1
      %p120 = scmp.ne.s32.totalorder %s115, %s117
      %p121 = scmp.eq.s32.totalorder %s17, 0
      %p122 = por %p120, %p121
      %p123 = scmp.ne.s32.totalorder %s115, %s117
      %p124 = scmp.eq.s32.totalorder %s22, 1
      %p125 = por %p123, %p124
      %p126 = scmp.ne.s32.totalorder %s117, %s118
      %p127 = scmp.eq.s32.totalorder %s22, 0
      %p128 = por %p126, %p127
      %p129 = scmp.ne.s32.totalorder %s117, %s118
      %p130 = scmp.eq.s32.totalorder %s23, 1
      %p131 = por %p129, %p130
      %p133 = scmp.ne.s32.totalorder %s118, %s132
      %p134 = scmp.eq.s32.totalorder %s23, 0
      %p135 = por %p133, %p134
      %s136 = ssub.s32 %s24, %s36
      %s137 = ssub.s32 %s25, %s32
      %s138 = sor.u32 %s136, %s137
      %p139 = scmp.eq.s32.totalorder %s138, 0
      %s141 = sadd.s32 %s140, 1
      %s142 = scalar_select %p139, %s140, %s141
      %p145 = pneg %p139
      %p146 = scmp.eq.s32.totalorder %s17, 1
      %p147 = por %p145, %p146
      %p148 = scmp.ne.s32.totalorder %s140, %s143
      %p149 = scmp.eq.s32.totalorder %s17, 0
      %p150 = por %p148, %p149
      %p151 = scmp.ne.s32.totalorder %s140, %s143
      %p152 = scmp.eq.s32.totalorder %s22, 1
      %p153 = por %p151, %p152
      %p154 = scmp.ne.s32.totalorder %s143, %s144
      %p155 = scmp.eq.s32.totalorder %s22, 0
      %p156 = por %p154, %p155
      %p157 = scmp.ne.s32.totalorder %s143, %s144
      %p158 = scmp.eq.s32.totalorder %s23, 1
      %p159 = por %p157, %p158
      %p161 = scmp.ne.s32.totalorder %s144, %s160
      %p162 = scmp.eq.s32.totalorder %s23, 0
      %p163 = por %p161, %p162
      %p164 = scmp.le.s32.totalorder 1, %s17
      %p165 = scmp.lt.s32.totalorder %s17, 3
      %p166 = pnand %p164, %p165
      %p167 = pneg %p166
      // Predicated region
      $region9: #{tpu_custom_call.1} parent=5 // pred_check
        _
      $region10: #{tpu_custom_call.1} parent=5 // pred_check_branch
        %169 = sbr.rel (%p166) target = $region12
      $region11: #{tpu_custom_call.1} parent=5 // pred_region
        %s170 = ssub.s32 %s17, 1
        // Predicated region
        $region13: #{tpu_custom_call.1} parent=11 // pred_check
          %p171 = pneg %p81
        $region14: #{tpu_custom_call.1} parent=11 // pred_check_branch
          %173 = sbr.rel (%p171) target = $region16
        $region15: #{tpu_custom_call.1} parent=11 // pred_region
          %s175 = ssub.s32 256, 256
          %176 = vsyncadd [#allocation7], %s175
          %s177 = smul.addr %s27, 64
          %s178 = scalar_lea.hbm %s1, %s177
          %s179 = sshll.u32 [#allocation6], 4
          %s180 = int_to_ptr.vmem [resolvable:$true] %s179
          %185 = dma.hbm_to_vmem [thread:$0]  %s178, 256, %s180, [#allocation7], 64, 64, 4
        $region16: #{tpu_custom_call.1} parent=11 // pred_fallthru
          _
        // Predicated region
        $region17: #{tpu_custom_call.1} parent=11 // pred_check
          %p186 = pneg %p107
        $region18: #{tpu_custom_call.1} parent=11 // pred_check_branch
          %188 = sbr.rel (%p186) target = $region20
        $region19: #{tpu_custom_call.1} parent=11 // pred_region
          %s190 = ssub.s32 256, 256
          %191 = vsyncadd [#allocation7], %s190
          %s192 = smul.addr %s27, 64
          %s193 = scalar_lea.hbm %s2, %s192
          %s194 = sshll.u32 [#allocation8], 4
          %s195 = int_to_ptr.vmem [resolvable:$true] %s194
          %200 = dma.hbm_to_vmem [thread:$0]  %s193, 256, %s195, [#allocation7], 64, 64, 4
        $region20: #{tpu_custom_call.1} parent=11 // pred_fallthru
          _
        // Predicated region
        $region21: #{tpu_custom_call.1} parent=11 // pred_check
          %p201 = pneg %p128
        $region22: #{tpu_custom_call.1} parent=11 // pred_check_branch
          %203 = sbr.rel (%p201) target = $region24
        $region23: #{tpu_custom_call.1} parent=11 // pred_region
          _
        $region24: #{tpu_custom_call.1} parent=11 // pred_fallthru
          _
      $region12: #{tpu_custom_call.1} parent=5 // pred_fallthru
        _
      %p204 = scmp.lt.s32.totalorder %s17, 2
      // Predicated region
      $region25: #{tpu_custom_call.1} parent=5 // pred_check
        %p205 = pneg %p204
      $region26: #{tpu_custom_call.1} parent=5 // pred_check_branch
        %207 = sbr.rel (%p205) target = $region28
      $region27: #{tpu_custom_call.1} parent=5 // pred_region
        // Predicated region
        $region29: #{tpu_custom_call.1} parent=27 // pred_check
          %p208 = pneg %p49
        $region30: #{tpu_custom_call.1} parent=27 // pred_check_branch
          %210 = sbr.rel (%p208) target = $region32
        $region31: #{tpu_custom_call.1} parent=27 // pred_region
          %s211 = sand.u32 %s39, 1
          %s212 = scalar_lea.sflag [#allocation4], %s211
          %s213 = sand.u32 %s39, 1
          %s214 = smul.addr %s213, 8
          %s215 = scalar_lea.vmem [#allocation3], %s214
          %s217 = ssub.s32 128, 128
          %218 = vsyncadd %s212, %s217
          %s219 = smul.addr %s24, 128
          %s220 = scalar_lea.hbm %s0, %s219
          %s222 = sshll.u32 %s215, 4
          %s223 = int_to_ptr.vmem [resolvable:$true] %s222
          %225 = dma.hbm_to_vmem [thread:$0]  %s220, 128, %s223, %s212
        $region32: #{tpu_custom_call.1} parent=27 // pred_fallthru
          _
      $region28: #{tpu_custom_call.1} parent=5 // pred_fallthru
        _
      %p226 = scmp.le.s32.totalorder 1, %s17
      %p227 = scmp.lt.s32.totalorder %s17, 3
      %p228 = pnand %p226, %p227
      %p229 = pneg %p228
      // Predicated region
      $region33: #{tpu_custom_call.1} parent=5 // pred_check
        _
      $region34: #{tpu_custom_call.1} parent=5 // pred_check_branch
        %231 = sbr.rel (%p228) target = $region36
      $region35: #{tpu_custom_call.1} parent=5 // pred_region
        %s232 = ssub.s32 %s17, 1
        %s233 = sand.u32 %s42, 1
        %s234 = scalar_lea.sflag [#allocation4], %s233
        %s235 = sand.u32 %s42, 1
        %s236 = smul.addr %s235, 8
        %s237 = scalar_lea.vmem [#allocation3], %s236
        // Predicated region
        $region37: #{tpu_custom_call.1} parent=35 // pred_check
          %p238 = pneg %p55
        $region38: #{tpu_custom_call.1} parent=35 // pred_check_branch
          %240 = sbr.rel (%p238) target = $region40
        $region39: #{tpu_custom_call.1} parent=35 // pred_region
          %241 = dma.done %s234, 128
        $region40: #{tpu_custom_call.1} parent=35 // pred_fallthru
          _
        // Predicated region
        $region41: #{tpu_custom_call.1} parent=35 // pred_check
          %p242 = pneg %p81
        $region42: #{tpu_custom_call.1} parent=35 // pred_check_branch
          %244 = sbr.rel (%p242) target = $region44
        $region43: #{tpu_custom_call.1} parent=35 // pred_region
          %245 = dma.done [#allocation7], 256
        $region44: #{tpu_custom_call.1} parent=35 // pred_fallthru
          _
        // Predicated region
        $region45: #{tpu_custom_call.1} parent=35 // pred_check
          %p246 = pneg %p107
        $region46: #{tpu_custom_call.1} parent=35 // pred_check_branch
          %248 = sbr.rel (%p246) target = $region48
        $region47: #{tpu_custom_call.1} parent=35 // pred_region
          %249 = dma.done [#allocation7], 256
        $region48: #{tpu_custom_call.1} parent=35 // pred_fallthru
          _
        %s250 = sand.u32 %s42, 1
        %s251 = scalar_lea.sflag [#allocation4], %s250
        %s252 = sand.u32 %s42, 1
        %s253 = smul.addr %s252, 8
        %s254 = scalar_lea.vmem [#allocation3], %s253
        %p255 = pneg %p55
        %p256 = pneg %p52
        %p257 = pneg %p81
        %p258 = pneg %p78
        %p259 = pneg %p107
        %p260 = pneg %p104
        %p261 = pneg %p128
        %p262 = pneg %p125
        %p263 = pneg %p156
        %p264 = pneg %p153
        %s265 = sand.u32 %s143, 1
        %s266 = scalar_lea.sflag [#allocation5], %s265
        %s267 = sand.u32 %s143, 1
        %s268 = smul.addr %s267, 8
        %s269 = scalar_lea.vmem [#allocation9], %s268
        %v271 = vld [vmem:[#allocation6] sm:$0xf]
        %v272 = vld [vmem:[#allocation6 + $0x4] sm:$0xf]
        %v273 = vld [vmem:[#allocation6 + $0x8] sm:$0xf]
        %v274 = vld [vmem:[#allocation6 + $0xc] sm:$0xf]
        %v275 = vld [vmem:[#allocation8] sm:$0xf]
        %v276 = vld [vmem:[#allocation8 + $0x4] sm:$0xf]
        %v277 = vld [vmem:[#allocation8 + $0x8] sm:$0xf]
        %v278 = vld [vmem:[#allocation8 + $0xc] sm:$0xf]
        %v279 = vld [vmem:[%s237] sm:$0xff]
        %v280 = vpack.c.bf16 %v279, %v279
        %v285 = vunpack.c.l.b16 %v271
        %v286 = vunpack.c.l.b16 %v272
        %v287 = vunpack.c.l.b16 %v273
        %v288 = vunpack.c.l.b16 %v274
        %v289 = vpack.c.b16 %v286, %v285
        %v290 = vpack.c.b16 %v288, %v287
        %vm293 = vcmask 261120
        %v295 = vsel %vm293, %v280, 0
        %297 = vmatprep.subr.bf16.mxu0 0
        %298 = vmatpush1.bf16.msra.mxu0 %v289
        %299 = vmatprep.subr.bf16.mxu0 0
        %300 = vmatpush1.bf16.msra.mxu0 %v290
        %301 = vmatprep.subr.bf16.mxu0 0
        %302 = vmatpush1.bf16.msra.mxu0 0
        %303 = vmatprep.subr.bf16.mxu0 0
        %304 = vmatpush1.bf16.msra.mxu0 0
        %305 = vmatprep.subr.bf16.mxu0 0
        %306 = vmatpush1.bf16.msra.mxu0 0
        %307 = vmatprep.subr.bf16.mxu0 0
        %308 = vmatpush1.bf16.msra.mxu0 0
        %309 = vmatprep.subr.bf16.mxu0 0
        %310 = vmatpush1.bf16.msra.mxu0 0
        %311 = vmatprep.subr.bf16.mxu0 0
        %312 = vmatpush1.bf16.msra.mxu0 0
        %313 = vmatprep.subr.bf16.mxu0 0
        %314 = vmatpush1.bf16.msra.mxu0 0
        %315 = vmatprep.subr.bf16.mxu0 0
        %316 = vmatpush1.bf16.msra.mxu0 0
        %317 = vmatprep.subr.bf16.mxu0 0
        %318 = vmatpush1.bf16.msra.mxu0 0
        %319 = vmatprep.subr.bf16.mxu0 0
        %320 = vmatpush1.bf16.msra.mxu0 0
        %321 = vmatprep.subr.bf16.mxu0 0
        %322 = vmatpush1.bf16.msra.mxu0 0
        %323 = vmatprep.subr.bf16.mxu0 0
        %324 = vmatpush1.bf16.msra.mxu0 0
        %325 = vmatprep.subr.bf16.mxu0 0
        %326 = vmatpush1.bf16.msra.mxu0 0
        %327 = vmatprep.subr.bf16.mxu0 0
        %328 = vmatpush1.bf16.msra.mxu0 0
        %329 = vmatprep.mubr.bf16.mxu0 0
        %330 = vmatmul.mubr.bf16.gmra.mrb[0].mxu0 %v295
        %v331 = vpop.f32.mrb[0].mxu0
        %v332 = vadd.f32 0.0, %v331
        %v333 = vpop.f32.mrb[0].mxu0
        %v334 = vpop.f32.mrb[0].mxu0
        %v335 = vpop.f32.mrb[0].mxu0
        %336 = vdwg.mxu0
        %v341 = vunpack.c.l.b16 %v275
        %v342 = vunpack.c.l.b16 %v276
        %v343 = vunpack.c.l.b16 %v277
        %v344 = vunpack.c.l.b16 %v278
        %v345 = vpack.c.b16 %v342, %v341
        %v346 = vpack.c.b16 %v344, %v343
        %349 = vmatprep.subr.bf16.mxu0 0
        %350 = vmatpush1.bf16.msra.mxu0 %v345
        %351 = vmatprep.subr.bf16.mxu0 0
        %352 = vmatpush1.bf16.msra.mxu0 %v346
        %353 = vmatprep.subr.bf16.mxu0 0
        %354 = vmatpush1.bf16.msra.mxu0 0
        %355 = vmatprep.subr.bf16.mxu0 0
        %356 = vmatpush1.bf16.msra.mxu0 0
        %357 = vmatprep.subr.bf16.mxu0 0
        %358 = vmatpush1.bf16.msra.mxu0 0
        %359 = vmatprep.subr.bf16.mxu0 0
        %360 = vmatpush1.bf16.msra.mxu0 0
        %361 = vmatprep.subr.bf16.mxu0 0
        %362 = vmatpush1.bf16.msra.mxu0 0
        %363 = vmatprep.subr.bf16.mxu0 0
        %364 = vmatpush1.bf16.msra.mxu0 0
        %365 = vmatprep.subr.bf16.mxu0 0
        %366 = vmatpush1.bf16.msra.mxu0 0
        %367 = vmatprep.subr.bf16.mxu0 0
        %368 = vmatpush1.bf16.msra.mxu0 0
        %369 = vmatprep.subr.bf16.mxu0 0
        %370 = vmatpush1.bf16.msra.mxu0 0
        %371 = vmatprep.subr.bf16.mxu0 0
        %372 = vmatpush1.bf16.msra.mxu0 0
        %373 = vmatprep.subr.bf16.mxu0 0
        %374 = vmatpush1.bf16.msra.mxu0 0
        %375 = vmatprep.subr.bf16.mxu0 0
        %376 = vmatpush1.bf16.msra.mxu0 0
        %377 = vmatprep.subr.bf16.mxu0 0
        %378 = vmatpush1.bf16.msra.mxu0 0
        %379 = vmatprep.subr.bf16.mxu0 0
        %380 = vmatpush1.bf16.msra.mxu0 0
        %381 = vmatprep.mubr.bf16.mxu0 0
        %382 = vmatmul.mubr.bf16.gmra.mrb[0].mxu0 %v295
        %v383 = vpop.f32.mrb[0].mxu0
        %v384 = vadd.f32 0.0, %v383
        %v385 = vpop.f32.mrb[0].mxu0
        %v386 = vpop.f32.mrb[0].mxu0
        %v387 = vpop.f32.mrb[0].mxu0
        %388 = vdwg.mxu0
        %v389 = vpack.c.bf16 %v332, %v332
        %vm390 = vcmask 257024
        %391 = vst.msk [vmem:[#allocation2] sm:$0xf] %vm390, %v389
        %v392 = vpack.c.bf16 %v384, %v384
        %v394 = vrot.slane %v392, 4
        %vm396 = vcmask 261124
        %397 = vst.msk [vmem:[#allocation2] sm:$0xf0] %vm396, %v394
        %v398 = vld [vmem:[%s3] sm:$0xf]
        %v399 = vld [vmem:[#allocation2] sm:$0xff]
        %vm400 = vcmask 130048
        %v402 = vsel %vm400, %v398, 0
        %404 = vmatprep.subr.bf16.mxu0 0
        %405 = vmatpush1.bf16.msra.mxu0 %v399
        %406 = vmatprep.subr.bf16.mxu0 0
        %407 = vmatpush1.bf16.msra.mxu0 0
        %408 = vmatprep.subr.bf16.mxu0 0
        %409 = vmatpush1.bf16.msra.mxu0 0
        %410 = vmatprep.subr.bf16.mxu0 0
        %411 = vmatpush1.bf16.msra.mxu0 0
        %412 = vmatprep.subr.bf16.mxu0 0
        %413 = vmatpush1.bf16.msra.mxu0 0
        %414 = vmatprep.subr.bf16.mxu0 0
        %415 = vmatpush1.bf16.msra.mxu0 0
        %416 = vmatprep.subr.bf16.mxu0 0
        %417 = vmatpush1.bf16.msra.mxu0 0
        %418 = vmatprep.subr.bf16.mxu0 0
        %419 = vmatpush1.bf16.msra.mxu0 0
        %420 = vmatprep.subr.bf16.mxu0 0
        %421 = vmatpush1.bf16.msra.mxu0 0
        %422 = vmatprep.subr.bf16.mxu0 0
        %423 = vmatpush1.bf16.msra.mxu0 0
        %424 = vmatprep.subr.bf16.mxu0 0
        %425 = vmatpush1.bf16.msra.mxu0 0
        %426 = vmatprep.subr.bf16.mxu0 0
        %427 = vmatpush1.bf16.msra.mxu0 0
        %428 = vmatprep.subr.bf16.mxu0 0
        %429 = vmatpush1.bf16.msra.mxu0 0
        %430 = vmatprep.subr.bf16.mxu0 0
        %431 = vmatpush1.bf16.msra.mxu0 0
        %432 = vmatprep.subr.bf16.mxu0 0
        %433 = vmatpush1.bf16.msra.mxu0 0
        %434 = vmatprep.subr.bf16.mxu0 0
        %435 = vmatpush1.bf16.msra.mxu0 0
        %436 = vmatprep.mubr.bf16.mxu0 0
        %437 = vmatmul.mubr.bf16.gmra.mrb[0].mxu0 %v402
        %v438 = vpop.f32.mrb[0].mxu0
        %v439 = vadd.f32 0.0, %v438
        %v440 = vpop.f32.mrb[0].mxu0
        %v441 = vpop.f32.mrb[0].mxu0
        %v442 = vpop.f32.mrb[0].mxu0
        %443 = vdwg.mxu0
        %444 = vst.msk [vmem:[%s269] sm:$0xff] %vm293, %v439
        %s445 = sand.u32 %s143, 1
        %s446 = scalar_lea.sflag [#allocation5], %s445
        %s447 = sand.u32 %s143, 1
        %s448 = smul.addr %s447, 8
        %s449 = scalar_lea.vmem [#allocation9], %s448
        // Predicated region
        $region49: #{tpu_custom_call.1} parent=35 // pred_check
          %p450 = pneg %p153
        $region50: #{tpu_custom_call.1} parent=35 // pred_check_branch
          %452 = sbr.rel (%p450) target = $region52
        $region51: #{tpu_custom_call.1} parent=35 // pred_region
          %s454 = ssub.s32 128, 128
          %455 = vsyncadd %s446, %s454
          %s456 = sadd.s32 %s27, %s26
          %s457 = smul.addr %s456, 128
          %s458 = scalar_lea.hbm %s4, %s457
          %s460 = sshll.u32 %s449, 4
          %s461 = int_to_ptr.vmem [resolvable:$true] %s460
          %463 = dma.vmem_to_hbm [thread:$0]  %s461, 128, %s458, %s446
        $region52: #{tpu_custom_call.1} parent=35 // pred_fallthru
          _
      $region36: #{tpu_custom_call.1} parent=5 // pred_fallthru
        _
      %p464 = scmp.le.s32.totalorder 2, %s17
      // Predicated region
      $region53: #{tpu_custom_call.1} parent=5 // pred_check
        %p465 = pneg %p464
      $region54: #{tpu_custom_call.1} parent=5 // pred_check_branch
        %467 = sbr.rel (%p465) target = $region56
      $region55: #{tpu_custom_call.1} parent=5 // pred_region
        %s468 = ssub.s32 %s17, 2
        // Predicated region
        $region57: #{tpu_custom_call.1} parent=55 // pred_check
          %p469 = pneg %p159
        $region58: #{tpu_custom_call.1} parent=55 // pred_check_branch
          %471 = sbr.rel (%p469) target = $region60
        $region59: #{tpu_custom_call.1} parent=55 // pred_region
          %s472 = sand.u32 %s144, 1
          %s473 = scalar_lea.sflag [#allocation5], %s472
          %s474 = sand.u32 %s144, 1
          %s475 = smul.addr %s474, 8
          %s476 = scalar_lea.vmem [#allocation9], %s475
          %477 = dma.done %s473, 128
        $region60: #{tpu_custom_call.1} parent=55 // pred_fallthru
          _
      $region56: #{tpu_custom_call.1} parent=5 // pred_fallthru
        _
    $region6: #{tpu_custom_call.1} parent=1 // loop_footer
      %s21 = sadd.s32 1, %s17
    $region7: #{tpu_custom_call.1} parent=1 // loop_footer_branch
      %16 = sbr.rel target = $region3
    $region8: #{tpu_custom_call.1} parent=1 // loop_exit
      _
    %478 = vsyncpa [#allocation4], 1
    %s479 = scalar_lea.sflag [#allocation4], 1
    %480 = vsyncpa %s479, 1
    %481 = vsyncpa [#allocation7], 1
    %482 = vsyncpa [#allocation5], 1
    %s483 = scalar_lea.sflag [#allocation5], 1
    %484 = vsyncpa %s483, 1

</llo_original>
